<compile_context>
chip_gen: v5e
topology: v5e:2x2
jax: 0.10.0
libtpu: 0.0.40
codegen_flags: <defaults>
</compile_context>

<pallas_src>
import jax
import jax.numpy as jnp
from jax.experimental import pallas as pl
from jax.experimental.pallas import tpu as pltpu


def _ie_mlp_kernel(x_ref, ie_ref, w1_ref, b1_ref, w2_ref, b2_ref, o_ref):
    # x_ref:  (tile_t, D)   row tile of (IE-unscaled) input
    # ie_ref: (tile_t, D)   matching rows of IE_weights
    # w1_ref: (D, H_pad), b1_ref: (1, H_pad)   (biases kept f32)
    # w2_ref: (H_pad, C_pad), b2_ref: (1, C_pad)
    # o_ref:  (tile_t, C_pad)  lane-dense f32 output block
    scaled = x_ref[...] * ie_ref[...]                          # x * IE_weights
    h = jnp.dot(scaled, w1_ref[...],
                preferred_element_type=jnp.float32) + b1_ref[...]
    h = jnp.maximum(h, 0.0)                                    # ReLU
    out = jnp.dot(h.astype(w2_ref.dtype), w2_ref[...],
                  preferred_element_type=jnp.float32) + b2_ref[...]
    o_ref[...] = out.astype(o_ref.dtype)


def _round_up(x, m):
    return ((x + m - 1) // m) * m


def multivariate_ie_forward(x, ie_weights, w1, b1, w2, b2,
                            *, compute_dtype=None, max_tile_rows=None):
    """Fused forward: (x * IE_weights) -> Linear -> ReLU -> Linear.

    x: (B, T, D) float; ie_weights: (T, D); w1: (D, H); b1: (H,);
    w2: (H, C); b2: (C,).  Returns (B, T, C) float32.

    compute_dtype: cast x / IE / W1 / W2 (e.g. jnp.bfloat16 on v6e/v7x for the
    HBM-bound regime) while keeping f32 MXU accumulation and f32 biases.
    max_tile_rows: optional cap on rows per grid step (testing / tuning).
    """
    B, T, D = x.shape
    Dw, H = w1.shape
    C = w2.shape[1]
    assert Dw == D and ie_weights.shape == (T, D)
    assert w2.shape[0] == H and b1.shape[-1] == H and b2.shape[-1] == C

    in_dtype = jnp.dtype(compute_dtype) if compute_dtype is not None else jnp.dtype(x.dtype)
    in_itemsize = in_dtype.itemsize
    align = 16 if in_itemsize < 4 else 8          # bf16 packs 2 rows / sublane

    x = x.astype(in_dtype)
    ie_weights = ie_weights.astype(in_dtype)
    w1c = w1.astype(in_dtype)
    w2c = w2.astype(in_dtype)

    # ---- Lane-dense padding of the inner-model widths (output + hidden). ----
    C_pad = _round_up(C, 128)
    H_pad = _round_up(H, 128)
    w1p = jnp.pad(w1c, ((0, 0), (0, H_pad - H)))
    b1p = jnp.pad(b1.astype(jnp.float32).reshape(1, H), ((0, 0), (0, H_pad - H)))
    w2p = jnp.pad(w2c, ((0, H_pad - H), (0, C_pad - C)))
    b2p = jnp.pad(b2.astype(jnp.float32).reshape(1, C), ((0, 0), (0, C_pad - C)))
    weights_bytes = (w1p.size + w2p.size) * in_itemsize + (b1p.size + b2p.size) * 4

    # ---- Pick the row-tile size: big enough to amortize the ~0.35us/step ----
    # pipeline overhead (target ~4 MB of x traffic per step), small enough
    # that the double-buffered streams stay within ~20 MB VMEM (v7x-safe).
    bytes_per_row_stream = D * in_itemsize + C_pad * 4
    cap = min((4 << 20) // max(1, D * in_itemsize),
              (20 << 20) // max(1, 2 * bytes_per_row_stream))
    if max_tile_rows is not None:
        cap = min(cap, int(max_tile_rows))
    cap = max(align, (cap // align) * align)

    T_pad = _round_up(T, align)

    if T_pad <= cap:
        # ---- Regime A: fuse B and T into one row axis; IE fully resident ----
        k = max(1, min(B, cap // T_pad))              # padded series per tile
        B_pad = _round_up(B, k)
        tile_t = k * T_pad
        xp = jnp.pad(x, ((0, B_pad - B), (0, T_pad - T), (0, 0)))
        iep = jnp.pad(ie_weights, ((0, T_pad - T), (0, 0)))
        x_rows = xp.reshape(B_pad * T_pad, D)
        ie_block = jnp.tile(iep, (k, 1))              # (tile_t, D), DMA'd once
        n_tiles = (B_pad * T_pad) // tile_t
        grid = (n_tiles,)
        in_specs = [
            pl.BlockSpec((tile_t, D), lambda i: (i, 0)),          # x rows
            pl.BlockSpec((tile_t, D), lambda i: (0, 0)),          # IE (resident)
            pl.BlockSpec((D, H_pad), lambda i: (0, 0)),           # W1 (resident)
            pl.BlockSpec((1, H_pad), lambda i: (0, 0)),           # b1
            pl.BlockSpec((H_pad, C_pad), lambda i: (0, 0)),       # W2
            pl.BlockSpec((1, C_pad), lambda i: (0, 0)),           # b2
        ]
        out_shape = jax.ShapeDtypeStruct((B_pad * T_pad, C_pad), jnp.float32)
        out_specs = pl.BlockSpec((tile_t, C_pad), lambda i: (i, 0))
        dims = ("parallel",)
        operands = (x_rows, ie_block, w1p, b1p, w2p, b2p)
        ie_stream_bytes = ie_block.size * in_itemsize
        rows_total = B_pad * T_pad

        def _post(o):
            return o.reshape(B_pad, T_pad, C_pad)[:B, :T, :C]
    else:
        # ---- Regime B: T too long for one tile. grid = (T_tiles, B) with ----
        # batch as the INNER axis so the IE block index is constant across it
        # (Pallas skips the re-DMA -> IE streamed from HBM exactly once).
        tile_t = cap
        T_pad = _round_up(T, tile_t)
        xp = jnp.pad(x, ((0, 0), (0, T_pad - T), (0, 0)))
        iep = jnp.pad(ie_weights, ((0, T_pad - T), (0, 0)))
        n_t = T_pad // tile_t
        grid = (n_t, B)
        in_specs = [
            pl.BlockSpec((None, tile_t, D), lambda t, b: (b, t, 0)),   # x
            pl.BlockSpec((tile_t, D), lambda t, b: (t, 0)),            # IE
            pl.BlockSpec((D, H_pad), lambda t, b: (0, 0)),
            pl.BlockSpec((1, H_pad), lambda t, b: (0, 0)),
            pl.BlockSpec((H_pad, C_pad), lambda t, b: (0, 0)),
            pl.BlockSpec((1, C_pad), lambda t, b: (0, 0)),
        ]
        out_shape = jax.ShapeDtypeStruct((B, T_pad, C_pad), jnp.float32)
        out_specs = pl.BlockSpec((None, tile_t, C_pad), lambda t, b: (b, t, 0))
        dims = ("parallel", "parallel")
        operands = (xp, iep, w1p, b1p, w2p, b2p)
        ie_stream_bytes = iep.size * in_itemsize
        rows_total = B * T_pad

        def _post(o):
            return o[:, :T, :C]

    # Cost estimate matching the actual DMA plan (x once, IE once, weights
    # once, output once) so XLA schedules surrounding HBM-heavy ops sensibly.
    cost = pl.CostEstimate(
        flops=int(2 * rows_total * (D * H_pad + H_pad * C_pad)),
        transcendentals=0,
        bytes_accessed=int(rows_total * D * in_itemsize
                           + ie_stream_bytes
                           + weights_bytes
                           + rows_total * C_pad * 4),
    )

    # Explicit VMEM budget with headroom (double-buffered streams + resident
    # weights + intermediate), capped at 64 MiB so it is v7x-safe.
    step_bytes_est = (2 * tile_t * (D * in_itemsize + C_pad * 4)   # x/out dbl-buf
                      + 2 * tile_t * D * in_itemsize               # IE (worst case)
                      + 2 * weights_bytes
                      + 2 * tile_t * H_pad * 4)                    # hidden activ.
    vmem_limit = int(min(max(32 << 20, 2 * step_bytes_est), 64 << 20))
    # TODO(synk): if D/H ever grow to large-model sizes, add K-tiling of W1/W2
    # and pipeline_mode=pl.Buffered(1) on the constant-index weight specs.

    out = pl.pallas_call(
        _ie_mlp_kernel,
        out_shape=out_shape,
        grid=grid,
        in_specs=in_specs,
        out_specs=out_specs,
        compiler_params=pltpu.CompilerParams(
            dimension_semantics=dims,
            vmem_limit_bytes=vmem_limit),
        cost_estimate=cost,
    )(*operands)

    return _post(out)


if __name__ == "__main__":
    key = jax.random.PRNGKey(0)

    def make_case(k, B, T, D, H, C):
        kx, kie, kw1, kb1, kw2, kb2 = jax.random.split(k, 6)
        x = jax.random.normal(kx, (B, T, D), dtype=jnp.float32)
        # PyTorch initializes IE_weights to ones; random values here so the
        # elementwise scaling is actually exercised by the reference check.
        ie = jax.random.uniform(kie, (T, D), dtype=jnp.float32)
        w1 = jax.random.normal(kw1, (D, H), dtype=jnp.float32) * 0.05
        b1 = jax.random.normal(kb1, (H,), dtype=jnp.float32) * 0.01
        w2 = jax.random.normal(kw2, (H, C), dtype=jnp.float32) * 0.05
        b2 = jax.random.normal(kb2, (C,), dtype=jnp.float32) * 0.01
        return x, ie, w1, b1, w2, b2

    def ref_forward(x, ie, w1, b1, w2, b2):
        B, T, D = x.shape
        s = (x * ie[None, :, :]).reshape(B * T, D)
        h = jnp.maximum(s @ w1 + b1, 0.0)
        return (h @ w2 + b2).reshape(B, T, w2.shape[1])

    cases = [
        # name,                        (B, T, D, H, C), kwargs,                              tol
        ("f32 demo",                   (2, 8, 32, 64, 8), dict(),                            1e-5),
        ("f32 multi-tile + T pad",     (4, 12, 32, 64, 8), dict(max_tile_rows=32),           1e-5),
        ("f32 long-T split grid",      (2, 32, 32, 64, 8), dict(max_tile_rows=16),           1e-5),
        ("bf16 inputs, f32 accum",     (2, 8, 32, 64, 8), dict(compute_dtype=jnp.bfloat16),  3e-2),
    ]
    keys = jax.random.split(key, len(cases))
    for (name, (B, T, D, H, C), kw, tol), k in zip(cases, keys):
        args = make_case(k, B, T, D, H, C)
        out = jax.block_until_ready(multivariate_ie_forward(*args, **kw))
        ref = ref_forward(*args)
        assert out.shape == ref.shape, name
        assert bool(jnp.allclose(out, ref, atol=tol, rtol=tol)), name

    # TODO(synk): training/validation loops, gradient bookkeeping
    # (store_IE_gradient, IE_grad_setting) and file logging are host-side
    # PyTorch machinery with no Pallas equivalent; only forward is kernelized.

    print("KERNEL_OK")
</pallas_src>

<mosaic_0001>
module attributes {stable_mosaic.version = 11 : i64} {
  func.func @_ie_mlp_kernel(%arg0: i32, %arg1: memref<16x32xf32, #tpu.memory_space<vmem>>, %arg2: memref<16x32xf32, #tpu.memory_space<vmem>>, %arg3: memref<32x128xf32, #tpu.memory_space<vmem>>, %arg4: memref<1x128xf32, #tpu.memory_space<vmem>>, %arg5: memref<128x128xf32, #tpu.memory_space<vmem>>, %arg6: memref<1x128xf32, #tpu.memory_space<vmem>>, %arg7: memref<16x128xf32, #tpu.memory_space<vmem>>) attributes {dimension_semantics = [#tpu.dimension_semantics<parallel>], iteration_bounds = array<i64: 1>, scalar_prefetch = 0 : i64, scratch_operands = 0 : i64, tpu.core_type = #tpu.core_type<tc>, window_params = [{transform_indices = @transform_0, window_bounds = array<i64: 16, 32>}, {pipeline_mode = #tpu.pipeline_mode<synchronous>, transform_indices = @transform_1, window_bounds = array<i64: 16, 32>}, {pipeline_mode = #tpu.pipeline_mode<synchronous>, transform_indices = @transform_2, window_bounds = array<i64: 32, 128>}, {pipeline_mode = #tpu.pipeline_mode<synchronous>, transform_indices = @transform_3, window_bounds = array<i64: 1, 128>}, {pipeline_mode = #tpu.pipeline_mode<synchronous>, transform_indices = @transform_4, window_bounds = array<i64: 128, 128>}, {pipeline_mode = #tpu.pipeline_mode<synchronous>, transform_indices = @transform_5, window_bounds = array<i64: 1, 128>}, {transform_indices = @transform_6, window_bounds = array<i64: 16, 128>}]} {
    %c0 = arith.constant 0 : index
    %c0_0 = arith.constant 0 : index
    %0 = vector.load %arg1[%c0, %c0_0] : memref<16x32xf32, #tpu.memory_space<vmem>>, vector<16x32xf32>
    %c0_1 = arith.constant 0 : index
    %c0_2 = arith.constant 0 : index
    %1 = vector.load %arg2[%c0_1, %c0_2] : memref<16x32xf32, #tpu.memory_space<vmem>>, vector<16x32xf32>
    %2 = arith.mulf %0, %1 : vector<16x32xf32>
    %c0_3 = arith.constant 0 : index
    %c0_4 = arith.constant 0 : index
    %3 = vector.load %arg3[%c0_3, %c0_4] : memref<32x128xf32, #tpu.memory_space<vmem>>, vector<32x128xf32>
    %cst = arith.constant dense<0.000000e+00> : vector<16x128xf32>
    %4 = tpu.matmul %2, %3, %cst {dimension_numbers = #tpu.dot_dimension_numbers<[1], [0], [0], [1], [0, 0, 1, 1], [], []>} : vector<16x32xf32>, vector<32x128xf32>, vector<16x128xf32> -> vector<16x128xf32>
    %c0_5 = arith.constant 0 : index
    %c0_6 = arith.constant 0 : index
    %5 = vector.load %arg4[%c0_5, %c0_6] : memref<1x128xf32, #tpu.memory_space<vmem>>, vector<1x128xf32>
    %6 = vector.broadcast %5 : vector<1x128xf32> to vector<16x128xf32>
    %7 = arith.addf %4, %6 : vector<16x128xf32>
    %cst_7 = arith.constant 0.000000e+00 : f32
    %8 = vector.broadcast %cst_7 : f32 to vector<16x128xf32>
    %9 = arith.maximumf %7, %8 : vector<16x128xf32>
    %c0_8 = arith.constant 0 : index
    %c0_9 = arith.constant 0 : index
    %10 = vector.load %arg5[%c0_8, %c0_9] : memref<128x128xf32, #tpu.memory_space<vmem>>, vector<128x128xf32>
    %cst_10 = arith.constant dense<0.000000e+00> : vector<16x128xf32>
    %11 = tpu.matmul %9, %10, %cst_10 {dimension_numbers = #tpu.dot_dimension_numbers<[1], [0], [0], [1], [0, 0, 1, 1], [], []>} : vector<16x128xf32>, vector<128x128xf32>, vector<16x128xf32> -> vector<16x128xf32>
    %c0_11 = arith.constant 0 : index
    %c0_12 = arith.constant 0 : index
    %12 = vector.load %arg6[%c0_11, %c0_12] : memref<1x128xf32, #tpu.memory_space<vmem>>, vector<1x128xf32>
    %13 = vector.broadcast %12 : vector<1x128xf32> to vector<16x128xf32>
    %14 = arith.addf %11, %13 : vector<16x128xf32>
    %c0_13 = arith.constant 0 : index
    %c0_14 = arith.constant 0 : index
    %15 = vector.load %arg7[%c0_13, %c0_14] : memref<16x128xf32, #tpu.memory_space<vmem>>, vector<16x128xf32>
    tpu.vector_store %arg7[%c0_13, %c0_14], %14 {strides = array<i32>} : memref<16x128xf32, #tpu.memory_space<vmem>>, vector<16x128xf32>,
    return
  }
  func.func @transform_0(%arg0: i32) -> (i32, i32) {
    %c0_i32 = arith.constant 0 : i32
    %c0_i32_0 = arith.constant 0 : i32
    return %arg0, %c0_i32 : i32, i32
  }
  func.func @transform_1(%arg0: i32) -> (i32, i32) {
    %c0_i32 = arith.constant 0 : i32
    %c0_i32_0 = arith.constant 0 : i32
    %c0_i32_1 = arith.constant 0 : i32
    return %c0_i32, %c0_i32_0 : i32, i32
  }
  func.func @transform_2(%arg0: i32) -> (i32, i32) {
    %c0_i32 = arith.constant 0 : i32
    %c0_i32_0 = arith.constant 0 : i32
    %c0_i32_1 = arith.constant 0 : i32
    return %c0_i32, %c0_i32_0 : i32, i32
  }
  func.func @transform_3(%arg0: i32) -> (i32, i32) {
    %c0_i32 = arith.constant 0 : i32
    %c0_i32_0 = arith.constant 0 : i32
    %c0_i32_1 = arith.constant 0 : i32
    return %c0_i32, %c0_i32_0 : i32, i32
  }
  func.func @transform_4(%arg0: i32) -> (i32, i32) {
    %c0_i32 = arith.constant 0 : i32
    %c0_i32_0 = arith.constant 0 : i32
    %c0_i32_1 = arith.constant 0 : i32
    return %c0_i32, %c0_i32_0 : i32, i32
  }
  func.func @transform_5(%arg0: i32) -> (i32, i32) {
    %c0_i32 = arith.constant 0 : i32
    %c0_i32_0 = arith.constant 0 : i32
    %c0_i32_1 = arith.constant 0 : i32
    return %c0_i32, %c0_i32_0 : i32, i32
  }
  func.func @transform_6(%arg0: i32) -> (i32, i32) {
    %c0_i32 = arith.constant 0 : i32
    %c0_i32_0 = arith.constant 0 : i32
    return %arg0, %c0_i32 : i32, i32
  }
}

</mosaic_0001>

<llo_original>
// kernel: tpu_custom_call.1
$region0: #{tpu_custom_call.1}
  #allocation0 [shape = 'u32[]', space=smem, size = 0x4, offset = 0x4, fixed_abs, tag = 'smem constant byte address 0x4 - core index']
  #allocation1 [shape = 'u32[72,128]{1,0:T(1,128)}', space=vmem, size = 0x9000, scoped, tag = 'internal scratch']
  %s0 = inlined_call_operand.hbm [shape: f32[16,32], index: 0, kind: input, shape index: {}]
  %s1 = inlined_call_operand.hbm [shape: f32[16,32], index: 1, kind: input, shape index: {}]
  %s2 = inlined_call_operand.hbm [shape: f32[32,128], index: 2, kind: input, shape index: {}]
  %s3 = inlined_call_operand.vmem [shape: f32[1,128], index: 3, kind: input, shape index: {}]
  %s4 = inlined_call_operand.hbm [shape: f32[128,128], index: 4, kind: input, shape index: {}]
  %s5 = inlined_call_operand.vmem [shape: f32[1,128], index: 5, kind: input, shape index: {}]
  %s6 = inlined_call_operand.hbm [shape: f32[16,128], index: 6, kind: output, shape index: {}]
  %s7 = sld [smem:[#allocation0]]
  $region50: #{tpu_custom_call.1} parent=0
    _
  %s9 = ssub.s32 1, %s7
  %s10 = scalar_select 0, %s9, %s7
  $region1: #{tpu_custom_call.1} parent=0
    #allocation2 [shape = 'u8[8192]{0}', space=vmem, size = 0x2000, scoped, tag = 'input window, operand 0, single buffered']
    #allocation3 [shape = 's32[1]{0}', space=sflag, size = 0x4, scoped, tag = 'scoped memory for tpu_custom_call.1']
    #allocation4 [shape = 's32[1]{0}', space=sflag, size = 0x4, scoped, tag = 'scoped memory for tpu_custom_call.1']
    #allocation5 [shape = 'u8[8192]{0}', space=vmem, size = 0x2000, scoped, tag = 'input window, operand 1, single buffered']
    #allocation6 [shape = 's32[1]{0}', space=sflag, size = 0x4, scoped, tag = 'scoped memory for tpu_custom_call.1']
    #allocation7 [shape = 'u8[16384]{0}', space=vmem, size = 0x4000, scoped, tag = 'input window, operand 2, single buffered']
    #allocation8 [shape = 'u8[65536]{0}', space=vmem, size = 0x10000, scoped, tag = 'input window, operand 4, single buffered']
    #allocation9 [shape = 's32[1]{0}', space=sflag, size = 0x4, scoped, tag = 'scoped memory for tpu_custom_call.1']
    #allocation10 [shape = 'u8[8192]{0}', space=vmem, size = 0x2000, scoped, tag = 'output window, operand 0, single buffered']
    %11 = vsyncpa [#allocation3], 0
    %12 = vsyncpa [#allocation6], 0
    %13 = vsyncpa [#allocation9], 0
    %14 = vsyncpa [#allocation4], 0
    // Predicated region
    $region2: #{tpu_custom_call.1} parent=1 // pred_check
      _
    $region3: #{tpu_custom_call.1} parent=1 // pred_check_branch
      %16 = sbr.rel (0) target = $region5
    $region4: #{tpu_custom_call.1} parent=1 // pred_region
      %18 = vsyncadd [#allocation3], 0
      %s19 = sshll.u32 %s0, 4
      %s20 = int_to_ptr.hbm [resolvable:$true] %s19
      %s21 = sshll.u32 [#allocation2], 4
      %s22 = int_to_ptr.vmem [resolvable:$true] %s21
      %27 = dma.hbm_to_vmem [thread:$0]  %s20, 256, %s22, [#allocation3], 128, 128, 8
    $region5: #{tpu_custom_call.1} parent=1 // pred_fallthru
      _
    // Predicated region
    $region6: #{tpu_custom_call.1} parent=1 // pred_check
      _
    $region7: #{tpu_custom_call.1} parent=1 // pred_check_branch
      %29 = sbr.rel (0) target = $region9
    $region8: #{tpu_custom_call.1} parent=1 // pred_region
      %31 = vsyncadd [#allocation6], 0
      %s32 = sshll.u32 %s1, 4
      %s33 = int_to_ptr.hbm [resolvable:$true] %s32
      %s34 = sshll.u32 [#allocation5], 4
      %s35 = int_to_ptr.vmem [resolvable:$true] %s34
      %40 = dma.hbm_to_vmem [thread:$0]  %s33, 256, %s35, [#allocation6], 128, 128, 8
    $region9: #{tpu_custom_call.1} parent=1 // pred_fallthru
      _
    // Predicated region
    $region10: #{tpu_custom_call.1} parent=1 // pred_check
      _
    $region11: #{tpu_custom_call.1} parent=1 // pred_check_branch
      %42 = sbr.rel (0) target = $region13
    $region12: #{tpu_custom_call.1} parent=1 // pred_region
      %44 = vsyncadd [#allocation6], 0
      %s45 = sshll.u32 %s2, 4
      %s46 = int_to_ptr.hbm [resolvable:$true] %s45
      %s47 = sshll.u32 [#allocation7], 4
      %s48 = int_to_ptr.vmem [resolvable:$true] %s47
      %53 = dma.hbm_to_vmem [thread:$0]  %s46, 512, %s48, [#allocation6], 128, 128, 8
    $region13: #{tpu_custom_call.1} parent=1 // pred_fallthru
      _
    // Predicated region
    $region14: #{tpu_custom_call.1} parent=1 // pred_check
      _
    $region15: #{tpu_custom_call.1} parent=1 // pred_check_branch
      %55 = sbr.rel (0) target = $region17
    $region16: #{tpu_custom_call.1} parent=1 // pred_region
      _
    $region17: #{tpu_custom_call.1} parent=1 // pred_fallthru
      _
    // Predicated region
    $region18: #{tpu_custom_call.1} parent=1 // pred_check
      _
    $region19: #{tpu_custom_call.1} parent=1 // pred_check_branch
      %57 = sbr.rel (0) target = $region21
    $region20: #{tpu_custom_call.1} parent=1 // pred_region
      %59 = vsyncadd [#allocation9], 0
      %s60 = sshll.u32 %s4, 4
      %s61 = int_to_ptr.hbm [resolvable:$true] %s60
      %s62 = sshll.u32 [#allocation8], 4
      %s63 = int_to_ptr.vmem [resolvable:$true] %s62
      %68 = dma.hbm_to_vmem [thread:$0]  %s61, 2048, %s63, [#allocation9], 128, 128, 8
    $region21: #{tpu_custom_call.1} parent=1 // pred_fallthru
      _
    // Predicated region
    $region22: #{tpu_custom_call.1} parent=1 // pred_check
      _
    $region23: #{tpu_custom_call.1} parent=1 // pred_check_branch
      %70 = sbr.rel (0) target = $region25
    $region24: #{tpu_custom_call.1} parent=1 // pred_region
      _
    $region25: #{tpu_custom_call.1} parent=1 // pred_fallthru
      _
    // Predicated region
    $region26: #{tpu_custom_call.1} parent=1 // pred_check
      _
    $region27: #{tpu_custom_call.1} parent=1 // pred_check_branch
      %72 = sbr.rel (0) target = $region29
    $region28: #{tpu_custom_call.1} parent=1 // pred_region
      %74 = dma.done [#allocation3], 256
    $region29: #{tpu_custom_call.1} parent=1 // pred_fallthru
      _
    // Predicated region
    $region30: #{tpu_custom_call.1} parent=1 // pred_check
      _
    $region31: #{tpu_custom_call.1} parent=1 // pred_check_branch
      %76 = sbr.rel (0) target = $region33
    $region32: #{tpu_custom_call.1} parent=1 // pred_region
      %78 = dma.done [#allocation6], 256
    $region33: #{tpu_custom_call.1} parent=1 // pred_fallthru
      _
    // Predicated region
    $region34: #{tpu_custom_call.1} parent=1 // pred_check
      _
    $region35: #{tpu_custom_call.1} parent=1 // pred_check_branch
      %80 = sbr.rel (0) target = $region37
    $region36: #{tpu_custom_call.1} parent=1 // pred_region
      %82 = dma.done [#allocation6], 512
    $region37: #{tpu_custom_call.1} parent=1 // pred_fallthru
      _
    // Predicated region
    $region38: #{tpu_custom_call.1} parent=1 // pred_check
      _
    $region39: #{tpu_custom_call.1} parent=1 // pred_check_branch
      %84 = sbr.rel (0) target = $region41
    $region40: #{tpu_custom_call.1} parent=1 // pred_region
      %86 = dma.done [#allocation9], 2048
    $region41: #{tpu_custom_call.1} parent=1 // pred_fallthru
      _
    %v87 = vld [vmem:[#allocation2] sm:$0xff]
    %v88 = vld [vmem:[#allocation2 + $0x8] sm:$0xff]
    %v89 = vld [vmem:[#allocation5] sm:$0xff]
    %v90 = vld [vmem:[#allocation5 + $0x8] sm:$0xff]
    %v91 = vmul.f32 %v87, %v89
    %v92 = vmul.f32 %v88, %v90
    %v93 = vld [vmem:[#allocation7] sm:$0xff]
    %v94 = vld [vmem:[#allocation7 + $0x8] sm:$0xff]
    %v95 = vld [vmem:[#allocation7 + $0x10] sm:$0xff]
    %v96 = vld [vmem:[#allocation7 + $0x18] sm:$0xff]
    %v97 = vld [vmem:[%s3] sm:$0x1]
    %v99 = vperm.slane %v97, 0
    %vm101 = vcmask 261120
    %v103 = vsel %vm101, %v91, 0
    %v106 = vsel %vm101, %v92, 0
    %108 = vmatpush.msra.mxu0 0.0
    %109 = vmatpush.msra.mxu0 0.0
    %110 = vmatpush.msra.mxu0 0.0
    %111 = vmatpush.msra.mxu0 0.0
    %112 = vmatpush.msra.mxu0 0.0
    %113 = vmatpush.msra.mxu0 0.0
    %114 = vmatpush.msra.mxu0 0.0
    %115 = vmatpush.msra.mxu0 0.0
    %116 = vmatpush.msra.mxu0 0.0
    %117 = vmatpush.msra.mxu0 0.0
    %118 = vmatpush.msra.mxu0 0.0
    %119 = vmatpush.msra.mxu0 0.0
    %120 = vmatpush.msra.mxu0 %v96
    %121 = vmatpush.msra.mxu0 %v95
    %122 = vmatpush.msra.mxu0 %v94
    %123 = vmatpush.msra.mxu0 %v93
    %124 = vmatmul.f32.gmra.mxu0 %v103
    %v125 = vpop.f32.mrf.mxu0
    %v126 = vadd.f32 %v99, %v125
    %127 = vmatmul.f32.gmra.mxu0 %v106
    %v128 = vpop.f32.mrf.mxu0
    %v129 = vadd.f32 %v99, %v128
    %130 = vdwg.mxu0
    %v131 = vmax.f32 %v126, 0.0
    %v132 = vmax.f32 %v129, 0.0
    %v133 = vld [vmem:[#allocation8] sm:$0xff]
    %v134 = vld [vmem:[#allocation8 + $0x8] sm:$0xff]
    %v135 = vld [vmem:[#allocation8 + $0x10] sm:$0xff]
    %v136 = vld [vmem:[#allocation8 + $0x18] sm:$0xff]
    %v137 = vld [vmem:[#allocation8 + $0x20] sm:$0xff]
    %v138 = vld [vmem:[#allocation8 + $0x28] sm:$0xff]
    %v139 = vld [vmem:[#allocation8 + $0x30] sm:$0xff]
    %v140 = vld [vmem:[#allocation8 + $0x38] sm:$0xff]
    %v141 = vld [vmem:[#allocation8 + $0x40] sm:$0xff]
    %v142 = vld [vmem:[#allocation8 + $0x48] sm:$0xff]
    %v143 = vld [vmem:[#allocation8 + $0x50] sm:$0xff]
    %v144 = vld [vmem:[#allocation8 + $0x58] sm:$0xff]
    %v145 = vld [vmem:[#allocation8 + $0x60] sm:$0xff]
    %v146 = vld [vmem:[#allocation8 + $0x68] sm:$0xff]
    %v147 = vld [vmem:[#allocation8 + $0x70] sm:$0xff]
    %v148 = vld [vmem:[#allocation8 + $0x78] sm:$0xff]
    %v149 = vld [vmem:[%s5] sm:$0x1]
    %v151 = vperm.slane %v149, 0
    %153 = vmatpush.msra.mxu0 %v148
    %154 = vmatpush.msra.mxu0 %v147
    %155 = vmatpush.msra.mxu0 %v146
    %156 = vmatpush.msra.mxu0 %v145
    %157 = vmatpush.msra.mxu0 %v144
    %158 = vmatpush.msra.mxu0 %v143
    %159 = vmatpush.msra.mxu0 %v142
    %160 = vmatpush.msra.mxu0 %v141
    %161 = vmatpush.msra.mxu0 %v140
    %162 = vmatpush.msra.mxu0 %v139
    %163 = vmatpush.msra.mxu0 %v138
    %164 = vmatpush.msra.mxu0 %v137
    %165 = vmatpush.msra.mxu0 %v136
    %166 = vmatpush.msra.mxu0 %v135
    %167 = vmatpush.msra.mxu0 %v134
    %168 = vmatpush.msra.mxu0 %v133
    %169 = vmatmul.f32.gmra.mxu0 %v131
    %v170 = vpop.f32.mrf.mxu0
    %v171 = vadd.f32 %v151, %v170
    %172 = vmatmul.f32.gmra.mxu0 %v132
    %v173 = vpop.f32.mrf.mxu0
    %v174 = vadd.f32 %v151, %v173
    %175 = vdwg.mxu0
    %176 = vst [vmem:[#allocation10] sm:$0xff] %v171
    %177 = vst [vmem:[#allocation10 + $0x8] sm:$0xff] %v174
    // Predicated region
    $region42: #{tpu_custom_call.1} parent=1 // pred_check
      _
    $region43: #{tpu_custom_call.1} parent=1 // pred_check_branch
      %179 = sbr.rel (0) target = $region45
    $region44: #{tpu_custom_call.1} parent=1 // pred_region
      %181 = vsyncadd [#allocation4], 0
      %s182 = sshll.u32 [#allocation10], 4
      %s183 = int_to_ptr.vmem [resolvable:$true] %s182
      %s184 = sshll.u32 %s6, 4
      %s185 = int_to_ptr.hbm [resolvable:$true] %s184
      %190 = dma.vmem_to_hbm [thread:$0]  %s183, 256, %s185, [#allocation4], 128, 128, 8
    $region45: #{tpu_custom_call.1} parent=1 // pred_fallthru
      _
    // Predicated region
    $region46: #{tpu_custom_call.1} parent=1 // pred_check
      _
    $region47: #{tpu_custom_call.1} parent=1 // pred_check_branch
      %192 = sbr.rel (0) target = $region49
    $region48: #{tpu_custom_call.1} parent=1 // pred_region
      %194 = dma.done [#allocation4], 256
    $region49: #{tpu_custom_call.1} parent=1 // pred_fallthru
      _
    %195 = vsyncpa [#allocation3], 1
    %196 = vsyncpa [#allocation6], 1
    %197 = vsyncpa [#allocation9], 1
    %198 = vsyncpa [#allocation4], 1

</llo_original>
